<compile_context>
chip_gen: v7x
topology: tpu7x:2x2x1
jax: 0.10.0
libtpu: 0.0.40
codegen_flags: <defaults>
</compile_context>

<pallas_src>
import jax
import jax.numpy as jnp
from jax.experimental import pallas as pl
from jax.experimental.pallas import tpu as pltpu


def _rup(n, m):
    return ((n + m - 1) // m) * m


def categorical_policy_forward(x, a, params, gumbel, *, tb=512):
    """Full categorical-policy forward in a single gridded Pallas kernel.

    x:      (B, in_features) float32
    a:      (B,) int32 action indices, or None
    gumbel: (B, action_dim) float32 Gumbel(0,1) noise for sampling
    """
    B, in_features = x.shape
    H = params["w2"].shape[0]
    A = params["w3"].shape[1]
    IN = in_features

    # ---- pack all weights + biases into ONE resident parameter blob ----------
    wcol = max(H, A)

    def pad_block(p, rows):
        p2 = p if p.ndim == 2 else p.reshape(1, -1)
        return jnp.pad(p2, ((0, rows - p2.shape[0]), (0, wcol - p2.shape[1])))

    r_w1, r_w2, r_w3 = _rup(IN, 8), _rup(H, 8), _rup(H, 8)
    o_w1 = 0
    o_w2 = o_w1 + r_w1
    o_w3 = o_w2 + r_w2
    o_b1 = o_w3 + r_w3
    o_b2 = o_b1 + 8
    o_b3 = o_b2 + 8
    pblob = jnp.concatenate(
        [
            pad_block(params["w1"], r_w1),
            pad_block(params["w2"], r_w2),
            pad_block(params["w3"], r_w3),
            pad_block(params["b1"], 8),
            pad_block(params["b2"], 8),
            pad_block(params["b3"], 8),
        ],
        axis=0,
    )

    # ---- batch tiling (TB rows per grid step, padded to a multiple of 8) -----
    tb = max(8, _rup(min(int(tb), B), 8))
    Bp = _rup(B, tb)
    pad_rows = Bp - B
    x_p = jnp.pad(x, ((0, pad_rows), (0, 0)))
    g_p = jnp.pad(gumbel, ((0, pad_rows), (0, 0)))
    if a is None:
        a_p = jnp.zeros((Bp, 1), jnp.int32)
    else:
        a_p = jnp.pad(a.reshape(B, 1).astype(jnp.int32), ((0, pad_rows), (0, 0)))

    def kernel(x_ref, g_ref, a_ref, p_ref, out_ref):
        x_blk = x_ref[...]

        # static slices into the resident parameter blob (all 8-row aligned)
        w1 = p_ref[o_w1:o_w1 + IN, 0:H]
        w2 = p_ref[o_w2:o_w2 + H, 0:H]
        w3 = p_ref[o_w3:o_w3 + H, 0:A]
        b1 = p_ref[o_b1:o_b1 + 1, 0:H]
        b2 = p_ref[o_b2:o_b2 + 1, 0:H]
        b3 = p_ref[o_b3:o_b3 + 1, 0:A]

        # MLP body producing logits (MXU + VPU/EUP)
        h1 = jnp.tanh(jnp.dot(x_blk, w1, preferred_element_type=jnp.float32) + b1)
        h2 = jnp.tanh(jnp.dot(h1, w2, preferred_element_type=jnp.float32) + b2)
        logits = jnp.dot(h2, w3, preferred_element_type=jnp.float32) + b3   # (tb, A)

        # numerically-stable log-softmax; single exp stream, no divisions
        m = jnp.max(logits, axis=-1, keepdims=True)
        zc = logits - m
        logsm = zc - jnp.log(jnp.sum(jnp.exp(zc), axis=-1, keepdims=True))

        # Gumbel-max categorical sample (argmax built from max + iota, no gather)
        scores = logits + g_ref[...]
        smax = jnp.max(scores, axis=-1, keepdims=True)
        col = jax.lax.broadcasted_iota(jnp.int32, scores.shape, 1)
        pi_f = jnp.min(
            jnp.where(scores >= smax, col.astype(jnp.float32), float(A)),
            axis=-1, keepdims=True,
        )                                              # (tb, 1) float, integer-valued
        pi_i = pi_f.astype(jnp.int32)

        # one-hot gathers of log-probs (no cross-lane gather needed)
        a_idx = a_ref[...]                             # (tb, 1) int32
        logp_pi = jnp.sum(jnp.where(col == pi_i, logsm, 0.0), axis=-1, keepdims=True)
        logp = jnp.sum(jnp.where(col == a_idx, logsm, 0.0), axis=-1, keepdims=True)

        # lane-dense packed output slab: col0 = pi, col1 = logp(a), col2 = logp(pi)
        oc = jax.lax.broadcasted_iota(jnp.int32, (tb, 128), 1)
        out_ref[...] = jnp.where(
            oc == 0, pi_f,
            jnp.where(oc == 1, logp, jnp.where(oc == 2, logp_pi, 0.0)),
        )

    out = pl.pallas_call(
        kernel,
        out_shape=jax.ShapeDtypeStruct((Bp, 128), jnp.float32),
        grid=(Bp // tb,),
        in_specs=[
            pl.BlockSpec((tb, IN), lambda i: (i, 0)),          # x tile
            pl.BlockSpec((tb, A), lambda i: (i, 0)),           # gumbel tile
            pl.BlockSpec((tb, 1), lambda i: (i, 0)),           # action indices tile
            pl.BlockSpec(pblob.shape, lambda i: (0, 0)),       # resident params (1 DMA)
        ],
        out_specs=pl.BlockSpec((tb, 128), lambda i: (i, 0)),   # lane-dense slab
        compiler_params=pltpu.CompilerParams(
            dimension_semantics=("parallel",),
        ),
    )(x_p, g_p, a_p, pblob)

    pi_out = out[:B, 0].astype(jnp.int32)
    logp_pi_out = out[:B, 2]
    logp_out = out[:B, 1] if a is not None else None
    return pi_out, logp_out, logp_pi_out


def init_params(key, in_features, hidden_sizes, action_dim):
    """Deterministic MLP-body parameter init (PyTorch-Linear-like uniform; biases zero)."""
    dims = [in_features] + list(hidden_sizes) + [action_dim]
    keys = jax.random.split(key, len(dims) - 1)
    params = {}
    for i, (fan_in, fan_out) in enumerate(zip(dims[:-1], dims[1:]), start=1):
        bound = 1.0 / (fan_in ** 0.5)
        params[f"w{i}"] = jax.random.uniform(
            keys[i - 1], (fan_in, fan_out), jnp.float32, -bound, bound
        )
        params[f"b{i}"] = jnp.zeros((fan_out,), jnp.float32)
    return params


if __name__ == "__main__":
    key = jax.random.PRNGKey(0)
    k_p, k_x, k_a, k_g = jax.random.split(key, 4)

    B, IN, HIDDEN, ACT = 24, 16, (32, 32), 4

    params = init_params(k_p, IN, HIDDEN, ACT)
    x = jax.random.normal(k_x, (B, IN), jnp.float32)
    a = jax.random.randint(k_a, (B,), 0, ACT, jnp.int32)
    g = jax.random.gumbel(k_g, (B, ACT), jnp.float32)   # noise for Categorical.sample()

    fwd = jax.jit(categorical_policy_forward, static_argnames=("tb",))
    pi, logp, logp_pi = fwd(x, a, params, g, tb=8)       # 3 grid steps at B=24
    jax.block_until_ready((pi, logp, logp_pi))

    # Pure-JAX reference check.
    h = jnp.tanh(x @ params["w1"] + params["b1"])
    h = jnp.tanh(h @ params["w2"] + params["b2"])
    logits = h @ params["w3"] + params["b3"]
    logsm = jax.nn.log_softmax(logits, axis=-1)
    pi_ref = jnp.argmax(logits + g, axis=-1).astype(jnp.int32)
    logp_pi_ref = jnp.take_along_axis(logsm, pi_ref[:, None], axis=1)[:, 0]
    logp_ref = jnp.take_along_axis(logsm, a[:, None], axis=1)[:, 0]

    assert jnp.array_equal(pi, pi_ref)
    assert jnp.allclose(logp_pi, logp_pi_ref, atol=1e-4)
    assert jnp.allclose(logp, logp_ref, atol=1e-4)

    print("KERNEL_OK")
</pallas_src>

<mosaic_0001>
module attributes {stable_mosaic.version = 11 : i64} {
  func.func @kernel(%arg0: i32, %arg1: memref<8x16xf32, #tpu.memory_space<vmem>>, %arg2: memref<8x4xf32, #tpu.memory_space<vmem>>, %arg3: memref<8x1xi32, #tpu.memory_space<vmem>>, %arg4: memref<104x32xf32, #tpu.memory_space<vmem>>, %arg5: memref<8x128xf32, #tpu.memory_space<vmem>>) attributes {dimension_semantics = [#tpu.dimension_semantics<parallel>], iteration_bounds = array<i64: 3>, scalar_prefetch = 0 : i64, scratch_operands = 0 : i64, tpu.core_type = #tpu.core_type<tc>, window_params = [{transform_indices = @transform_0, window_bounds = array<i64: 8, 16>}, {transform_indices = @transform_1, window_bounds = array<i64: 8, 4>}, {transform_indices = @transform_2, window_bounds = array<i64: 8, 1>}, {pipeline_mode = #tpu.pipeline_mode<synchronous>, transform_indices = @transform_3, window_bounds = array<i64: 104, 32>}, {transform_indices = @transform_4, window_bounds = array<i64: 8, 128>}]} {
    %c0 = arith.constant 0 : index
    %c0_0 = arith.constant 0 : index
    %0 = vector.load %arg1[%c0, %c0_0] : memref<8x16xf32, #tpu.memory_space<vmem>>, vector<8x16xf32>
    %c0_1 = arith.constant 0 : index
    %c0_2 = arith.constant 0 : index
    %1 = vector.load %arg4[%c0_1, %c0_2] : memref<104x32xf32, #tpu.memory_space<vmem>>, vector<16x32xf32>
    %c16 = arith.constant 16 : index
    %c0_3 = arith.constant 0 : index
    %2 = vector.load %arg4[%c16, %c0_3] : memref<104x32xf32, #tpu.memory_space<vmem>>, vector<32x32xf32>
    %c48 = arith.constant 48 : index
    %c0_4 = arith.constant 0 : index
    %3 = vector.load %arg4[%c48, %c0_4] : memref<104x32xf32, #tpu.memory_space<vmem>>, vector<32x4xf32>
    %c80 = arith.constant 80 : index
    %c0_5 = arith.constant 0 : index
    %4 = vector.load %arg4[%c80, %c0_5] : memref<104x32xf32, #tpu.memory_space<vmem>>, vector<1x32xf32>
    %c88 = arith.constant 88 : index
    %c0_6 = arith.constant 0 : index
    %5 = vector.load %arg4[%c88, %c0_6] : memref<104x32xf32, #tpu.memory_space<vmem>>, vector<1x32xf32>
    %c96 = arith.constant 96 : index
    %c0_7 = arith.constant 0 : index
    %6 = vector.load %arg4[%c96, %c0_7] : memref<104x32xf32, #tpu.memory_space<vmem>>, vector<1x4xf32>
    %cst = arith.constant dense<0.000000e+00> : vector<8x32xf32>
    %7 = tpu.matmul %0, %1, %cst {dimension_numbers = #tpu.dot_dimension_numbers<[1], [0], [0], [1], [0, 0, 1, 1], [], []>} : vector<8x16xf32>, vector<16x32xf32>, vector<8x32xf32> -> vector<8x32xf32>
    %8 = vector.broadcast %4 : vector<1x32xf32> to vector<8x32xf32>
    %9 = arith.addf %7, %8 : vector<8x32xf32>
    %10 = math.tanh %9 : vector<8x32xf32>
    %cst_8 = arith.constant dense<0.000000e+00> : vector<8x32xf32>
    %11 = tpu.matmul %10, %2, %cst_8 {dimension_numbers = #tpu.dot_dimension_numbers<[1], [0], [0], [1], [0, 0, 1, 1], [], []>} : vector<8x32xf32>, vector<32x32xf32>, vector<8x32xf32> -> vector<8x32xf32>
    %12 = vector.broadcast %5 : vector<1x32xf32> to vector<8x32xf32>
    %13 = arith.addf %11, %12 : vector<8x32xf32>
    %14 = math.tanh %13 : vector<8x32xf32>
    %cst_9 = arith.constant dense<0.000000e+00> : vector<8x4xf32>
    %15 = tpu.matmul %14, %3, %cst_9 {dimension_numbers = #tpu.dot_dimension_numbers<[1], [0], [0], [1], [0, 0, 1, 1], [], []>} : vector<8x32xf32>, vector<32x4xf32>, vector<8x4xf32> -> vector<8x4xf32>
    %16 = vector.broadcast %6 : vector<1x4xf32> to vector<8x4xf32>
    %17 = arith.addf %15, %16 : vector<8x4xf32>
    %cst_10 = arith.constant dense<0xFF800000> : vector<8xf32>
    %18 = vector.multi_reduction <maximumf>, %17, %cst_10 [1] : vector<8x4xf32> to vector<8xf32>
    %19 = vector.shape_cast %18 : vector<8xf32> to vector<8x1xf32>
    %20 = vector.broadcast %19 : vector<8x1xf32> to vector<8x4xf32>
    %21 = arith.subf %17, %20 : vector<8x4xf32>
    %22 = math.exp %21 : vector<8x4xf32>
    %cst_11 = arith.constant dense<0.000000e+00> : vector<8xf32>
    %23 = vector.multi_reduction <add>, %22, %cst_11 [1] : vector<8x4xf32> to vector<8xf32>
    %24 = vector.shape_cast %23 : vector<8xf32> to vector<8x1xf32>
    %25 = math.log %24 : vector<8x1xf32>
    %26 = vector.broadcast %25 : vector<8x1xf32> to vector<8x4xf32>
    %27 = arith.subf %21, %26 : vector<8x4xf32>
    %c0_12 = arith.constant 0 : index
    %c0_13 = arith.constant 0 : index
    %28 = vector.load %arg2[%c0_12, %c0_13] : memref<8x4xf32, #tpu.memory_space<vmem>>, vector<8x4xf32>
    %29 = arith.addf %17, %28 : vector<8x4xf32>
    %cst_14 = arith.constant dense<0xFF800000> : vector<8xf32>
    %30 = vector.multi_reduction <maximumf>, %29, %cst_14 [1] : vector<8x4xf32> to vector<8xf32>
    %31 = vector.shape_cast %30 : vector<8xf32> to vector<8x1xf32>
    %32 = tpu.iota {dimensions = array<i32: 1>} : vector<8x4xi32>
    %33 = vector.broadcast %31 : vector<8x1xf32> to vector<8x4xf32>
    %34 = arith.cmpf oge, %29, %33 : vector<8x4xf32>
    %35 = arith.sitofp %32 : vector<8x4xi32> to vector<8x4xf32>
    %cst_15 = arith.constant 4.000000e+00 : f32
    %36 = vector.broadcast %cst_15 : f32 to vector<8x4xf32>
    %37 = arith.select %34, %35, %36 : vector<8x4xi1>, vector<8x4xf32>
    %cst_16 = arith.constant dense<0x7F800000> : vector<8xf32>
    %38 = vector.multi_reduction <minimumf>, %37, %cst_16 [1] : vector<8x4xf32> to vector<8xf32>
    %39 = vector.shape_cast %38 : vector<8xf32> to vector<8x1xf32>
    %40 = arith.fptosi %39 : vector<8x1xf32> to vector<8x1xi32>
    %c0_17 = arith.constant 0 : index
    %c0_18 = arith.constant 0 : index
    %41 = vector.load %arg3[%c0_17, %c0_18] : memref<8x1xi32, #tpu.memory_space<vmem>>, vector<8x1xi32>
    %42 = vector.broadcast %40 : vector<8x1xi32> to vector<8x4xi32>
    %43 = arith.cmpi eq, %32, %42 : vector<8x4xi32>
    %cst_19 = arith.constant 0.000000e+00 : f32
    %44 = vector.broadcast %cst_19 : f32 to vector<8x4xf32>
    %45 = arith.select %43, %27, %44 : vector<8x4xi1>, vector<8x4xf32>
    %cst_20 = arith.constant dense<0.000000e+00> : vector<8xf32>
    %46 = vector.multi_reduction <add>, %45, %cst_20 [1] : vector<8x4xf32> to vector<8xf32>
    %47 = vector.shape_cast %46 : vector<8xf32> to vector<8x1xf32>
    %48 = vector.broadcast %41 : vector<8x1xi32> to vector<8x4xi32>
    %49 = arith.cmpi eq, %32, %48 : vector<8x4xi32>
    %cst_21 = arith.constant 0.000000e+00 : f32
    %50 = vector.broadcast %cst_21 : f32 to vector<8x4xf32>
    %51 = arith.select %49, %27, %50 : vector<8x4xi1>, vector<8x4xf32>
    %cst_22 = arith.constant dense<0.000000e+00> : vector<8xf32>
    %52 = vector.multi_reduction <add>, %51, %cst_22 [1] : vector<8x4xf32> to vector<8xf32>
    %53 = vector.shape_cast %52 : vector<8xf32> to vector<8x1xf32>
    %54 = tpu.iota {dimensions = array<i32: 1>} : vector<8x128xi32>
    %c0_i32 = arith.constant 0 : i32
    %55 = vector.broadcast %c0_i32 : i32 to vector<8x128xi32>
    %56 = arith.cmpi eq, %54, %55 : vector<8x128xi32>
    %c1_i32 = arith.constant 1 : i32
    %57 = vector.broadcast %c1_i32 : i32 to vector<8x128xi32>
    %58 = arith.cmpi eq, %54, %57 : vector<8x128xi32>
    %c2_i32 = arith.constant 2 : i32
    %59 = vector.broadcast %c2_i32 : i32 to vector<8x128xi32>
    %60 = arith.cmpi eq, %54, %59 : vector<8x128xi32>
    %cst_23 = arith.constant 0.000000e+00 : f32
    %61 = vector.shape_cast %47 : vector<8x1xf32> to vector<8x1xf32>
    %62 = vector.broadcast %61 : vector<8x1xf32> to vector<8x128xf32>
    %63 = vector.broadcast %cst_23 : f32 to vector<8x128xf32>
    %64 = arith.select %60, %62, %63 : vector<8x128xi1>, vector<8x128xf32>
    %65 = vector.shape_cast %53 : vector<8x1xf32> to vector<8x1xf32>
    %66 = vector.broadcast %65 : vector<8x1xf32> to vector<8x128xf32>
    %67 = arith.select %58, %66, %64 : vector<8x128xi1>, vector<8x128xf32>
    %68 = vector.shape_cast %39 : vector<8x1xf32> to vector<8x1xf32>
    %69 = vector.broadcast %68 : vector<8x1xf32> to vector<8x128xf32>
    %70 = arith.select %56, %69, %67 : vector<8x128xi1>, vector<8x128xf32>
    %c0_24 = arith.constant 0 : index
    %c0_25 = arith.constant 0 : index
    %71 = vector.load %arg5[%c0_24, %c0_25] : memref<8x128xf32, #tpu.memory_space<vmem>>, vector<8x128xf32>
    tpu.vector_store %arg5[%c0_24, %c0_25], %70 {strides = array<i32>} : memref<8x128xf32, #tpu.memory_space<vmem>>, vector<8x128xf32>,
    return
  }
  func.func @transform_0(%arg0: i32) -> (i32, i32) {
    %c0_i32 = arith.constant 0 : i32
    %c0_i32_0 = arith.constant 0 : i32
    return %arg0, %c0_i32 : i32, i32
  }
  func.func @transform_1(%arg0: i32) -> (i32, i32) {
    %c0_i32 = arith.constant 0 : i32
    %c0_i32_0 = arith.constant 0 : i32
    return %arg0, %c0_i32 : i32, i32
  }
  func.func @transform_2(%arg0: i32) -> (i32, i32) {
    %c0_i32 = arith.constant 0 : i32
    %c0_i32_0 = arith.constant 0 : i32
    return %arg0, %c0_i32 : i32, i32
  }
  func.func @transform_3(%arg0: i32) -> (i32, i32) {
    %c0_i32 = arith.constant 0 : i32
    %c0_i32_0 = arith.constant 0 : i32
    %c0_i32_1 = arith.constant 0 : i32
    return %c0_i32, %c0_i32_0 : i32, i32
  }
  func.func @transform_4(%arg0: i32) -> (i32, i32) {
    %c0_i32 = arith.constant 0 : i32
    %c0_i32_0 = arith.constant 0 : i32
    return %arg0, %c0_i32 : i32, i32
  }
}

</mosaic_0001>

<llo_original>
// kernel: categorical_policy_forward.1
$region0: #{categorical_policy_forward.1}
  #allocation0 [shape = 'u32[]', space=smem, size = 0x4, offset = 0x4, fixed_abs, tag = 'smem constant byte address 0x4 - core index']
  #allocation1 [shape = 'u32[144,128]{1,0:T(1,128)}', space=vmem, size = 0x12000, scoped, tag = 'internal scratch']
  %s0 = inlined_call_operand.vmem [shape: f32[24,16], index: 0, kind: input, shape index: {}]
  %s1 = inlined_call_operand.vmem [shape: f32[24,4], index: 1, kind: input, shape index: {}]
  %s2 = inlined_call_operand.vmem [shape: s32[24,1], index: 2, kind: input, shape index: {}]
  %s3 = inlined_call_operand.vmem [shape: f32[104,32], index: 3, kind: input, shape index: {}]
  %s4 = inlined_call_operand.vmem [shape: f32[24,128], index: 4, kind: output, shape index: {}]
  %s5 = sld [smem:[#allocation0]]
  $region49: #{categorical_policy_forward.1} parent=0
    _
  %s7 = ssub.s32 1, %s5
  %s8 = scalar_select 0, %s7, %s5
  loop: start=0, step=1, limit=5
  $region2: #{categorical_policy_forward.1} parent=0 // loop_pre_header
    _
  $region3: #{categorical_policy_forward.1} parent=0 // loop_header
    %s10 = sphi 0, %s14
    %p11 = scmp.ge.s32.totalorder %s10, 5
    %s20 = sphi 0, %s22
    %s23 = sphi 0, %s20
    %s24 = sphi 0, %s23
    %s40 = sphi 0, %s24
    %s46 = sphi 0, %s48
    %s49 = sphi 0, %s46
    %s50 = sphi 0, %s49
    %s66 = sphi 0, %s50
    %s72 = sphi 0, %s74
    %s75 = sphi 0, %s72
    %s76 = sphi 0, %s75
    %s92 = sphi 0, %s76
    %s96 = sphi 0, %s96
    %s98 = sphi 0, %s96
    %s99 = sphi 0, %s98
    %s113 = sphi 0, %s99
    %s119 = sphi 0, %s121
    %s122 = sphi 0, %s119
    %s123 = sphi 0, %s122
    %s139 = sphi 0, %s123
  $region4: #{categorical_policy_forward.1} parent=0 // loop_header_branch
    %13 = sbr.rel (%p11) target = $region8
  $region5: #{categorical_policy_forward.1} parent=0 // loop_body
    %s15 = ssub.s32 %s10, 1
    %s16 = ssub.s32 %s10, 2
    %s17 = sadd.s32 %s10, 1
    %s18 = ssub.s32 %s10, %s17
    %p19 = scmp.eq.s32.totalorder %s18, 0
    %s21 = sadd.s32 %s20, 1
    %s22 = scalar_select %p19, %s20, %s21
    %p25 = pneg %p19
    %p26 = scmp.eq.s32.totalorder %s10, 2
    %p27 = por %p25, %p26
    %p28 = scmp.ne.s32.totalorder %s20, %s23
    %p29 = scmp.eq.s32.totalorder %s10, 0
    %p30 = por %p28, %p29
    %p31 = scmp.ne.s32.totalorder %s20, %s23
    %p32 = scmp.eq.s32.totalorder %s15, 2
    %p33 = por %p31, %p32
    %p34 = scmp.ne.s32.totalorder %s23, %s24
    %p35 = scmp.eq.s32.totalorder %s15, 0
    %p36 = por %p34, %p35
    %p37 = scmp.ne.s32.totalorder %s23, %s24
    %p38 = scmp.eq.s32.totalorder %s16, 2
    %p39 = por %p37, %p38
    %p41 = scmp.ne.s32.totalorder %s24, %s40
    %p42 = scmp.eq.s32.totalorder %s16, 0
    %p43 = por %p41, %p42
    %s44 = ssub.s32 %s10, %s17
    %p45 = scmp.eq.s32.totalorder %s44, 0
    %s47 = sadd.s32 %s46, 1
    %s48 = scalar_select %p45, %s46, %s47
    %p51 = pneg %p45
    %p52 = scmp.eq.s32.totalorder %s10, 2
    %p53 = por %p51, %p52
    %p54 = scmp.ne.s32.totalorder %s46, %s49
    %p55 = scmp.eq.s32.totalorder %s10, 0
    %p56 = por %p54, %p55
    %p57 = scmp.ne.s32.totalorder %s46, %s49
    %p58 = scmp.eq.s32.totalorder %s15, 2
    %p59 = por %p57, %p58
    %p60 = scmp.ne.s32.totalorder %s49, %s50
    %p61 = scmp.eq.s32.totalorder %s15, 0
    %p62 = por %p60, %p61
    %p63 = scmp.ne.s32.totalorder %s49, %s50
    %p64 = scmp.eq.s32.totalorder %s16, 2
    %p65 = por %p63, %p64
    %p67 = scmp.ne.s32.totalorder %s50, %s66
    %p68 = scmp.eq.s32.totalorder %s16, 0
    %p69 = por %p67, %p68
    %s70 = ssub.s32 %s10, %s17
    %p71 = scmp.eq.s32.totalorder %s70, 0
    %s73 = sadd.s32 %s72, 1
    %s74 = scalar_select %p71, %s72, %s73
    %p77 = pneg %p71
    %p78 = scmp.eq.s32.totalorder %s10, 2
    %p79 = por %p77, %p78
    %p80 = scmp.ne.s32.totalorder %s72, %s75
    %p81 = scmp.eq.s32.totalorder %s10, 0
    %p82 = por %p80, %p81
    %p83 = scmp.ne.s32.totalorder %s72, %s75
    %p84 = scmp.eq.s32.totalorder %s15, 2
    %p85 = por %p83, %p84
    %p86 = scmp.ne.s32.totalorder %s75, %s76
    %p87 = scmp.eq.s32.totalorder %s15, 0
    %p88 = por %p86, %p87
    %p89 = scmp.ne.s32.totalorder %s75, %s76
    %p90 = scmp.eq.s32.totalorder %s16, 2
    %p91 = por %p89, %p90
    %p93 = scmp.ne.s32.totalorder %s76, %s92
    %p94 = scmp.eq.s32.totalorder %s16, 0
    %p95 = por %p93, %p94
    %s97 = sadd.s32 %s96, 1
    %p100 = scmp.eq.s32.totalorder %s10, 2
    %p101 = scmp.ne.s32.totalorder %s96, %s98
    %p102 = scmp.eq.s32.totalorder %s10, 0
    %p103 = por %p101, %p102
    %p104 = scmp.ne.s32.totalorder %s96, %s98
    %p105 = scmp.eq.s32.totalorder %s15, 2
    %p106 = por %p104, %p105
    %p107 = scmp.ne.s32.totalorder %s98, %s99
    %p108 = scmp.eq.s32.totalorder %s15, 0
    %p109 = por %p107, %p108
    %p110 = scmp.ne.s32.totalorder %s98, %s99
    %p111 = scmp.eq.s32.totalorder %s16, 2
    %p112 = por %p110, %p111
    %p114 = scmp.ne.s32.totalorder %s99, %s113
    %p115 = scmp.eq.s32.totalorder %s16, 0
    %p116 = por %p114, %p115
    %s117 = ssub.s32 %s10, %s17
    %p118 = scmp.eq.s32.totalorder %s117, 0
    %s120 = sadd.s32 %s119, 1
    %s121 = scalar_select %p118, %s119, %s120
    %p124 = pneg %p118
    %p125 = scmp.eq.s32.totalorder %s10, 2
    %p126 = por %p124, %p125
    %p127 = scmp.ne.s32.totalorder %s119, %s122
    %p128 = scmp.eq.s32.totalorder %s10, 0
    %p129 = por %p127, %p128
    %p130 = scmp.ne.s32.totalorder %s119, %s122
    %p131 = scmp.eq.s32.totalorder %s15, 2
    %p132 = por %p130, %p131
    %p133 = scmp.ne.s32.totalorder %s122, %s123
    %p134 = scmp.eq.s32.totalorder %s15, 0
    %p135 = por %p133, %p134
    %p136 = scmp.ne.s32.totalorder %s122, %s123
    %p137 = scmp.eq.s32.totalorder %s16, 2
    %p138 = por %p136, %p137
    %p140 = scmp.ne.s32.totalorder %s123, %s139
    %p141 = scmp.eq.s32.totalorder %s16, 0
    %p142 = por %p140, %p141
    %p143 = scmp.le.s32.totalorder 1, %s10
    %p144 = scmp.lt.s32.totalorder %s10, 4
    %p145 = pnand %p143, %p144
    %p146 = pneg %p145
    // Predicated region
    $region9: #{categorical_policy_forward.1} parent=5 // pred_check
      _
    $region10: #{categorical_policy_forward.1} parent=5 // pred_check_branch
      %148 = sbr.rel (%p145) target = $region12
    $region11: #{categorical_policy_forward.1} parent=5 // pred_region
      %s149 = ssub.s32 %s10, 1
      // Predicated region
      $region13: #{categorical_policy_forward.1} parent=11 // pred_check
        %p150 = pneg %p109
      $region14: #{categorical_policy_forward.1} parent=11 // pred_check_branch
        %152 = sbr.rel (%p150) target = $region16
      $region15: #{categorical_policy_forward.1} parent=11 // pred_region
        _
      $region16: #{categorical_policy_forward.1} parent=11 // pred_fallthru
        _
    $region12: #{categorical_policy_forward.1} parent=5 // pred_fallthru
      _
    %p153 = scmp.lt.s32.totalorder %s10, 3
    // Predicated region
    $region17: #{categorical_policy_forward.1} parent=5 // pred_check
      %p154 = pneg %p153
    $region18: #{categorical_policy_forward.1} parent=5 // pred_check_branch
      %156 = sbr.rel (%p154) target = $region20
    $region19: #{categorical_policy_forward.1} parent=5 // pred_region
      // Predicated region
      $region21: #{categorical_policy_forward.1} parent=19 // pred_check
        %p157 = pneg %p30
      $region22: #{categorical_policy_forward.1} parent=19 // pred_check_branch
        %159 = sbr.rel (%p157) target = $region24
      $region23: #{categorical_policy_forward.1} parent=19 // pred_region
        %p160 = scmp.lt.s32.totalorder %s10, 2
        %s161 = scalar_select %p160, %s10, 2
        %s162 = smul.addr %s161, 8
        %s163 = scalar_lea.vmem %s0, %s162
      $region24: #{categorical_policy_forward.1} parent=19 // pred_fallthru
        _
      // Predicated region
      $region25: #{categorical_policy_forward.1} parent=19 // pred_check
        %p164 = pneg %p56
      $region26: #{categorical_policy_forward.1} parent=19 // pred_check_branch
        %166 = sbr.rel (%p164) target = $region28
      $region27: #{categorical_policy_forward.1} parent=19 // pred_region
        %p167 = scmp.lt.s32.totalorder %s10, 2
        %s168 = scalar_select %p167, %s10, 2
        %s169 = smul.addr %s168, 8
        %s170 = scalar_lea.vmem %s1, %s169
      $region28: #{categorical_policy_forward.1} parent=19 // pred_fallthru
        _
      // Predicated region
      $region29: #{categorical_policy_forward.1} parent=19 // pred_check
        %p171 = pneg %p82
      $region30: #{categorical_policy_forward.1} parent=19 // pred_check_branch
        %173 = sbr.rel (%p171) target = $region32
      $region31: #{categorical_policy_forward.1} parent=19 // pred_region
        %p174 = scmp.lt.s32.totalorder %s10, 2
        %s175 = scalar_select %p174, %s10, 2
        %s176 = smul.addr %s175, 8
        %s177 = scalar_lea.vmem %s2, %s176
      $region32: #{categorical_policy_forward.1} parent=19 // pred_fallthru
        _
    $region20: #{categorical_policy_forward.1} parent=5 // pred_fallthru
      _
    %p178 = scmp.le.s32.totalorder 1, %s10
    %p179 = scmp.lt.s32.totalorder %s10, 4
    %p180 = pnand %p178, %p179
    %p181 = pneg %p180
    // Predicated region
    $region33: #{categorical_policy_forward.1} parent=5 // pred_check
      _
    $region34: #{categorical_policy_forward.1} parent=5 // pred_check_branch
      %183 = sbr.rel (%p180) target = $region36
    $region35: #{categorical_policy_forward.1} parent=5 // pred_region
      %s184 = ssub.s32 %s10, 1
      %p185 = scmp.lt.s32.totalorder %s15, 2
      %s186 = scalar_select %p185, %s15, 2
      %s187 = smul.addr %s186, 8
      %s188 = scalar_lea.vmem %s0, %s187
      %p189 = pneg %p36
      %p190 = pneg %p33
      %p191 = scmp.lt.s32.totalorder %s15, 2
      %s192 = scalar_select %p191, %s15, 2
      %s193 = smul.addr %s192, 8
      %s194 = scalar_lea.vmem %s1, %s193
      %p195 = pneg %p62
      %p196 = pneg %p59
      %p197 = scmp.lt.s32.totalorder %s15, 2
      %s198 = scalar_select %p197, %s15, 2
      %s199 = smul.addr %s198, 8
      %s200 = scalar_lea.vmem %s2, %s199
      %p201 = pneg %p88
      %p202 = pneg %p85
      %p203 = pneg %p109
      %p204 = pneg %p106
      %p205 = pneg %p135
      %p206 = pneg %p132
      %p207 = scmp.lt.s32.totalorder %s15, 2
      %s208 = scalar_select %p207, %s15, 2
      %s209 = smul.addr %s208, 8
      %s210 = scalar_lea.vmem %s4, %s209
      %p211 = scmp.lt.s32.totalorder %s15, 2
      %s212 = scalar_select %p211, %s15, 2
      %s213 = smul.addr %s212, 8
      %s214 = scalar_lea.vmem %s0, %s213
      %p215 = scmp.lt.s32.totalorder %s15, 2
      %s216 = scalar_select %p215, %s15, 2
      %s217 = smul.addr %s216, 8
      %s218 = scalar_lea.vmem %s1, %s217
      %p219 = scmp.lt.s32.totalorder %s15, 2
      %s220 = scalar_select %p219, %s15, 2
      %s221 = smul.addr %s220, 8
      %s222 = scalar_lea.vmem %s2, %s221
      %p223 = scmp.lt.s32.totalorder %s15, 2
      %s224 = scalar_select %p223, %s15, 2
      %s225 = smul.addr %s224, 8
      %s226 = scalar_lea.vmem %s4, %s225
      %v227 = vld [vmem:[%s214] sm:$0xff]
      %v228 = vld [vmem:[%s3] sm:$0xff]
      %v229 = vld [vmem:[%s3 + $0x8] sm:$0xff]
      %v230 = vld [vmem:[%s3 + $0x10] sm:$0xff]
      %v231 = vld [vmem:[%s3 + $0x18] sm:$0xff]
      %v232 = vld [vmem:[%s3 + $0x20] sm:$0xff]
      %v233 = vld [vmem:[%s3 + $0x28] sm:$0xff]
      %v234 = vld [vmem:[%s3 + $0x30] sm:$0xff]
      %v235 = vld [vmem:[%s3 + $0x38] sm:$0xff]
      %v236 = vld [vmem:[%s3 + $0x40] sm:$0xff]
      %v237 = vld [vmem:[%s3 + $0x48] sm:$0xff]
      %v238 = vld [vmem:[%s3 + $0x50] sm:$0x1]
      %v239 = vld [vmem:[%s3 + $0x58] sm:$0x1]
      %v240 = vld [vmem:[%s3 + $0x60] sm:$0x1]
      %v241 = vlaneseq
      %v242 = vshrl.u32 %v241, 7
      %v243 = vsub.s32 0, %v242
      %v244 = vrot.slane %v238, %v243
      %vm245 = vcmask 130048
      %v247 = vsel %vm245, %v227, 0
      %249 = vmatprep.subr.mxu0 0.0
      %250 = vmatpush1.msra.mxu0 %v228
      %251 = vmatprep.subr.mxu0 0.0
      %252 = vmatpush1.msra.mxu0 %v229
      %253 = vmatprep.subr.mxu0 0.0
      %254 = vmatpush1.msra.mxu0 0.0
      %255 = vmatprep.subr.mxu0 0.0
      %256 = vmatpush1.msra.mxu0 0.0
      %257 = vmatprep.subr.mxu0 0.0
      %258 = vmatpush1.msra.mxu0 0.0
      %259 = vmatprep.subr.mxu0 0.0
      %260 = vmatpush1.msra.mxu0 0.0
      %261 = vmatprep.subr.mxu0 0.0
      %262 = vmatpush1.msra.mxu0 0.0
      %263 = vmatprep.subr.mxu0 0.0
      %264 = vmatpush1.msra.mxu0 0.0
      %265 = vmatprep.subr.mxu0 0.0
      %266 = vmatpush1.msra.mxu0 0.0
      %267 = vmatprep.subr.mxu0 0.0
      %268 = vmatpush1.msra.mxu0 0.0
      %269 = vmatprep.subr.mxu0 0.0
      %270 = vmatpush1.msra.mxu0 0.0
      %271 = vmatprep.subr.mxu0 0.0
      %272 = vmatpush1.msra.mxu0 0.0
      %273 = vmatprep.subr.mxu0 0.0
      %274 = vmatpush1.msra.mxu0 0.0
      %275 = vmatprep.subr.mxu0 0.0
      %276 = vmatpush1.msra.mxu0 0.0
      %277 = vmatprep.subr.mxu0 0.0
      %278 = vmatpush1.msra.mxu0 0.0
      %279 = vmatprep.subr.mxu0 0.0
      %280 = vmatpush1.msra.mxu0 0.0
      %281 = vmatprep.subr.mxu0 0.0
      %282 = vmatpush1.msra.mxu0 0.0
      %283 = vmatprep.subr.mxu0 0.0
      %284 = vmatpush1.msra.mxu0 0.0
      %285 = vmatprep.subr.mxu0 0.0
      %286 = vmatpush1.msra.mxu0 0.0
      %287 = vmatprep.subr.mxu0 0.0
      %288 = vmatpush1.msra.mxu0 0.0
      %289 = vmatprep.subr.mxu0 0.0
      %290 = vmatpush1.msra.mxu0 0.0
      %291 = vmatprep.subr.mxu0 0.0
      %292 = vmatpush1.msra.mxu0 0.0
      %293 = vmatprep.subr.mxu0 0.0
      %294 = vmatpush1.msra.mxu0 0.0
      %295 = vmatprep.subr.mxu0 0.0
      %296 = vmatpush1.msra.mxu0 0.0
      %297 = vmatprep.subr.mxu0 0.0
      %298 = vmatpush1.msra.mxu0 0.0
      %299 = vmatprep.subr.mxu0 0.0
      %300 = vmatpush1.msra.mxu0 0.0
      %301 = vmatprep.subr.mxu0 0.0
      %302 = vmatpush1.msra.mxu0 0.0
      %303 = vmatprep.subr.mxu0 0.0
      %304 = vmatpush1.msra.mxu0 0.0
      %305 = vmatprep.subr.mxu0 0.0
      %306 = vmatpush1.msra.mxu0 0.0
      %307 = vmatprep.subr.mxu0 0.0
      %308 = vmatpush1.msra.mxu0 0.0
      %309 = vmatprep.subr.mxu0 0.0
      %310 = vmatpush1.msra.mxu0 0.0
      %311 = vmatprep.subr.mxu0 0.0
      %312 = vmatpush1.msra.mxu0 0.0
      %313 = vmatprep.mubr.f32.mxu0 0.0
      %314 = vmatmul.mubr.f32.gmra.mrb[0].mxu0 %v247
      %v315 = vpop.f32.mrb[0].mxu0
      %v316 = vadd.f32 %v244, %v315
      %v317 = vpop.f32.mrb[0].mxu0
      %318 = vdwg.mxu0
      %v319 = vtanh.pop %v316
      %v320 = vlaneseq
      %v321 = vshrl.u32 %v320, 7
      %v322 = vsub.s32 0, %v321
      %v323 = vrot.slane %v239, %v322
      %vm324 = vcmask 261120
      %v326 = vsel %vm324, %v319, 0
      %328 = vmatprep.subr.mxu0 0.0
      %329 = vmatpush1.msra.mxu0 %v230
      %330 = vmatprep.subr.mxu0 0.0
      %331 = vmatpush1.msra.mxu0 %v231
      %332 = vmatprep.subr.mxu0 0.0
      %333 = vmatpush1.msra.mxu0 %v232
      %334 = vmatprep.subr.mxu0 0.0
      %335 = vmatpush1.msra.mxu0 %v233
      %336 = vmatprep.subr.mxu0 0.0
      %337 = vmatpush1.msra.mxu0 0.0
      %338 = vmatprep.subr.mxu0 0.0
      %339 = vmatpush1.msra.mxu0 0.0
      %340 = vmatprep.subr.mxu0 0.0
      %341 = vmatpush1.msra.mxu0 0.0
      %342 = vmatprep.subr.mxu0 0.0
      %343 = vmatpush1.msra.mxu0 0.0
      %344 = vmatprep.subr.mxu0 0.0
      %345 = vmatpush1.msra.mxu0 0.0
      %346 = vmatprep.subr.mxu0 0.0
      %347 = vmatpush1.msra.mxu0 0.0
      %348 = vmatprep.subr.mxu0 0.0
      %349 = vmatpush1.msra.mxu0 0.0
      %350 = vmatprep.subr.mxu0 0.0
      %351 = vmatpush1.msra.mxu0 0.0
      %352 = vmatprep.subr.mxu0 0.0
      %353 = vmatpush1.msra.mxu0 0.0
      %354 = vmatprep.subr.mxu0 0.0
      %355 = vmatpush1.msra.mxu0 0.0
      %356 = vmatprep.subr.mxu0 0.0
      %357 = vmatpush1.msra.mxu0 0.0
      %358 = vmatprep.subr.mxu0 0.0
      %359 = vmatpush1.msra.mxu0 0.0
      %360 = vmatprep.subr.mxu0 0.0
      %361 = vmatpush1.msra.mxu0 0.0
      %362 = vmatprep.subr.mxu0 0.0
      %363 = vmatpush1.msra.mxu0 0.0
      %364 = vmatprep.subr.mxu0 0.0
      %365 = vmatpush1.msra.mxu0 0.0
      %366 = vmatprep.subr.mxu0 0.0
      %367 = vmatpush1.msra.mxu0 0.0
      %368 = vmatprep.subr.mxu0 0.0
      %369 = vmatpush1.msra.mxu0 0.0
      %370 = vmatprep.subr.mxu0 0.0
      %371 = vmatpush1.msra.mxu0 0.0
      %372 = vmatprep.subr.mxu0 0.0
      %373 = vmatpush1.msra.mxu0 0.0
      %374 = vmatprep.subr.mxu0 0.0
      %375 = vmatpush1.msra.mxu0 0.0
      %376 = vmatprep.subr.mxu0 0.0
      %377 = vmatpush1.msra.mxu0 0.0
      %378 = vmatprep.subr.mxu0 0.0
      %379 = vmatpush1.msra.mxu0 0.0
      %380 = vmatprep.subr.mxu0 0.0
      %381 = vmatpush1.msra.mxu0 0.0
      %382 = vmatprep.subr.mxu0 0.0
      %383 = vmatpush1.msra.mxu0 0.0
      %384 = vmatprep.subr.mxu0 0.0
      %385 = vmatpush1.msra.mxu0 0.0
      %386 = vmatprep.subr.mxu0 0.0
      %387 = vmatpush1.msra.mxu0 0.0
      %388 = vmatprep.subr.mxu0 0.0
      %389 = vmatpush1.msra.mxu0 0.0
      %390 = vmatprep.subr.mxu0 0.0
      %391 = vmatpush1.msra.mxu0 0.0
      %392 = vmatprep.mubr.f32.mxu0 0.0
      %393 = vmatmul.mubr.f32.gmra.mrb[0].mxu0 %v326
      %v394 = vpop.f32.mrb[0].mxu0
      %v395 = vadd.f32 %v323, %v394
      %v396 = vpop.f32.mrb[0].mxu0
      %397 = vdwg.mxu0
      %v398 = vtanh.pop %v395
      %v399 = vlaneseq
      %v400 = vshrl.u32 %v399, 7
      %v401 = vsub.s32 0, %v400
      %v402 = vrot.slane %v240, %v401
      %v404 = vsel %vm324, %v398, 0
      %406 = vmatprep.subr.mxu0 0.0
      %407 = vmatpush1.msra.mxu0 %v234
      %408 = vmatprep.subr.mxu0 0.0
      %409 = vmatpush1.msra.mxu0 %v235
      %410 = vmatprep.subr.mxu0 0.0
      %411 = vmatpush1.msra.mxu0 %v236
      %412 = vmatprep.subr.mxu0 0.0
      %413 = vmatpush1.msra.mxu0 %v237
      %414 = vmatprep.subr.mxu0 0.0
      %415 = vmatpush1.msra.mxu0 0.0
      %416 = vmatprep.subr.mxu0 0.0
      %417 = vmatpush1.msra.mxu0 0.0
      %418 = vmatprep.subr.mxu0 0.0
      %419 = vmatpush1.msra.mxu0 0.0
      %420 = vmatprep.subr.mxu0 0.0
      %421 = vmatpush1.msra.mxu0 0.0
      %422 = vmatprep.subr.mxu0 0.0
      %423 = vmatpush1.msra.mxu0 0.0
      %424 = vmatprep.subr.mxu0 0.0
      %425 = vmatpush1.msra.mxu0 0.0
      %426 = vmatprep.subr.mxu0 0.0
      %427 = vmatpush1.msra.mxu0 0.0
      %428 = vmatprep.subr.mxu0 0.0
      %429 = vmatpush1.msra.mxu0 0.0
      %430 = vmatprep.subr.mxu0 0.0
      %431 = vmatpush1.msra.mxu0 0.0
      %432 = vmatprep.subr.mxu0 0.0
      %433 = vmatpush1.msra.mxu0 0.0
      %434 = vmatprep.subr.mxu0 0.0
      %435 = vmatpush1.msra.mxu0 0.0
      %436 = vmatprep.subr.mxu0 0.0
      %437 = vmatpush1.msra.mxu0 0.0
      %438 = vmatprep.subr.mxu0 0.0
      %439 = vmatpush1.msra.mxu0 0.0
      %440 = vmatprep.subr.mxu0 0.0
      %441 = vmatpush1.msra.mxu0 0.0
      %442 = vmatprep.subr.mxu0 0.0
      %443 = vmatpush1.msra.mxu0 0.0
      %444 = vmatprep.subr.mxu0 0.0
      %445 = vmatpush1.msra.mxu0 0.0
      %446 = vmatprep.subr.mxu0 0.0
      %447 = vmatpush1.msra.mxu0 0.0
      %448 = vmatprep.subr.mxu0 0.0
      %449 = vmatpush1.msra.mxu0 0.0
      %450 = vmatprep.subr.mxu0 0.0
      %451 = vmatpush1.msra.mxu0 0.0
      %452 = vmatprep.subr.mxu0 0.0
      %453 = vmatpush1.msra.mxu0 0.0
      %454 = vmatprep.subr.mxu0 0.0
      %455 = vmatpush1.msra.mxu0 0.0
      %456 = vmatprep.subr.mxu0 0.0
      %457 = vmatpush1.msra.mxu0 0.0
      %458 = vmatprep.subr.mxu0 0.0
      %459 = vmatpush1.msra.mxu0 0.0
      %460 = vmatprep.subr.mxu0 0.0
      %461 = vmatpush1.msra.mxu0 0.0
      %462 = vmatprep.subr.mxu0 0.0
      %463 = vmatpush1.msra.mxu0 0.0
      %464 = vmatprep.subr.mxu0 0.0
      %465 = vmatpush1.msra.mxu0 0.0
      %466 = vmatprep.subr.mxu0 0.0
      %467 = vmatpush1.msra.mxu0 0.0
      %468 = vmatprep.subr.mxu0 0.0
      %469 = vmatpush1.msra.mxu0 0.0
      %470 = vmatprep.mubr.f32.mxu0 0.0
      %471 = vmatmul.mubr.f32.gmra.mrb[0].mxu0 %v404
      %v472 = vpop.f32.mrb[0].mxu0
      %v473 = vadd.f32 %v402, %v472
      %v474 = vpop.f32.mrb[0].mxu0
      %475 = vdwg.mxu0
      %vm476 = vcmask 31744
      %v477 = vsel %vm476, %v473, -inf
      %478 = vmax.xlane.f32.xlu0 %v477
      %v479 = vpop.xlane.xlu0 %478
      %v480 = vsub.f32 %v473, %v479
      %v481 = vmul.f32 %v480, 1.442695
      %v482 = vpow.pop %v481
      %v483 = vsel %vm476, %v482, 0.0
      %484 = vadd.xlane.f32.xlu0 %v483
      %v485 = vpop.xlane.xlu0 %484
      %v486 = vlog2.pop %v485
      %v487 = vmul.f32 %v486, 0.6931472
      %v488 = vsub.f32 %v480, %v487
      %v489 = vld [vmem:[%s218] sm:$0xff]
      %v490 = vadd.f32 %v473, %v489
      %v491 = vsel %vm476, %v490, -inf
      %492 = vmax.xlane.f32.xlu0 %v491
      %v493 = vpop.xlane.xlu0 %492
      %v494 = vlaneseq
      %v495 = vand.u32 %v494, 127
      %vm496 = vcmp.ge.f32.partialorder %v490, %v493
      %v497 = vcvt.s32.f32 %v495
      %v498 = vsel %vm496, %v497, 4.0
      %v499 = vsel %vm476, %v498, inf
      %500 = vmin.xlane.f32.xlu0 %v499
      %v501 = vpop.xlane.xlu0 %500
      %v502 = vcvt.f32.s32.to.zero.pseudo %v501
      %v503 = vld [vmem:[%s222] sm:$0xff]
      %vm504 = vcmp.eq.s32.totalorder %v495, %v502
      %v505 = vsel %vm504, %v488, 0.0
      %v506 = vsel %vm476, %v505, 0.0
      %507 = vadd.xlane.f32.xlu0 %v506
      %v508 = vpop.xlane.xlu0 %507
      %509 = vset.pattern.permute.xlu0 0
      %510 = vperm.xlu0 %509, %v503
      %v511 = vpop.permute.xlu0 %510
      %vm512 = vcmp.eq.s32.totalorder %v495, %v511
      %v513 = vsel %vm512, %v488, 0.0
      %v514 = vsel %vm476, %v513, 0.0
      %515 = vadd.xlane.f32.xlu0 %v514
      %v516 = vpop.xlane.xlu0 %515
      %vm517 = vcmp.eq.s32.totalorder %v495, 0
      %vm518 = vcmp.eq.s32.totalorder %v495, 1
      %vm519 = vcmp.eq.s32.totalorder %v495, 2
      %v520 = vsel %vm519, %v508, 0.0
      %v521 = vsel %vm518, %v516, %v520
      %v522 = vsel %vm517, %v501, %v521
      %523 = vst [vmem:[%s226] sm:$0xff] %v522
      %p524 = scmp.lt.s32.totalorder %s15, 2
      %s525 = scalar_select %p524, %s15, 2
      %s526 = smul.addr %s525, 8
      %s527 = scalar_lea.vmem %s4, %s526
      // Predicated region
      $region37: #{categorical_policy_forward.1} parent=35 // pred_check
        %p528 = pneg %p132
      $region38: #{categorical_policy_forward.1} parent=35 // pred_check_branch
        %530 = sbr.rel (%p528) target = $region40
      $region39: #{categorical_policy_forward.1} parent=35 // pred_region
        _
      $region40: #{categorical_policy_forward.1} parent=35 // pred_fallthru
        _
    $region36: #{categorical_policy_forward.1} parent=5 // pred_fallthru
      _
    %p531 = scmp.le.s32.totalorder 2, %s10
    // Predicated region
    $region41: #{categorical_policy_forward.1} parent=5 // pred_check
      %p532 = pneg %p531
    $region42: #{categorical_policy_forward.1} parent=5 // pred_check_branch
      %534 = sbr.rel (%p532) target = $region44
    $region43: #{categorical_policy_forward.1} parent=5 // pred_region
      %s535 = ssub.s32 %s10, 2
      // Predicated region
      $region45: #{categorical_policy_forward.1} parent=43 // pred_check
        %p536 = pneg %p138
      $region46: #{categorical_policy_forward.1} parent=43 // pred_check_branch
        %538 = sbr.rel (%p536) target = $region48
      $region47: #{categorical_policy_forward.1} parent=43 // pred_region
        %p539 = scmp.lt.s32.totalorder %s16, 2
        %s540 = scalar_select %p539, %s16, 2
        %s541 = smul.addr %s540, 8
        %s542 = scalar_lea.vmem %s4, %s541
      $region48: #{categorical_policy_forward.1} parent=43 // pred_fallthru
        _
    $region44: #{categorical_policy_forward.1} parent=5 // pred_fallthru
      _
  $region6: #{categorical_policy_forward.1} parent=0 // loop_footer
    %s14 = sadd.s32 1, %s10
  $region7: #{categorical_policy_forward.1} parent=0 // loop_footer_branch
    %9 = sbr.rel target = $region3
  $region8: #{categorical_policy_forward.1} parent=0 // loop_exit
    _

</llo_original>
